<compile_context>
chip_gen: v7x
topology: tpu7x:2x2x1
jax: 0.10.0
libtpu: 0.0.40
codegen_flags: <defaults>
</compile_context>

<pallas_src>
import functools

import jax
import jax.numpy as jnp
from jax.experimental import pallas as pl
from jax.experimental.pallas import tpu as pltpu


def _round_up(x, m):
    return ((x + m - 1) // m) * m


def _instance_loss_kernel(feat_ref, label_ref, out_ref, kn_ref, acc_ref, *,
                          gamma, tm, b_real):
    # feat_ref : [B_pad, D_pad] f32  (VMEM, resident across the whole grid)
    # label_ref: [TM, 1]        i32  (VMEM, target column per query row)
    # out_ref  : [1, 1]         f32  (VMEM, scalar loss, written once)
    # kn_ref   : [B_pad, D_pad] bf16 (VMEM scratch: normalized rows, MXU LHS+RHS)
    # acc_ref  : [1, 1]         f32  (VMEM scratch: running sum of lse-picked)
    i = pl.program_id(0)

    @pl.when(i == 0)
    def _init():
        x = feat_ref[...]
        norm = jnp.sqrt(jnp.sum(x * x, axis=1, keepdims=True)) + jnp.float32(1e-6)
        inv = pl.reciprocal(norm, approx=False)        # exact: preserve norm accuracy
        kn_ref[...] = (x * inv).astype(jnp.bfloat16)   # normalized rows, bf16 MXU operand
        acc_ref[...] = jnp.zeros_like(acc_ref)

    # Query tile: TM already-normalized rows sliced from the bf16 scratch
    # (normalization is done exactly once for the whole batch at step 0).
    row0 = pl.multiple_of(i * tm, tm)
    qn = kn_ref[pl.ds(row0, tm), :]                                      # [TM, D_pad] bf16

    # sim tile = gamma * (normed_q @ normed_keys.T); no materialized transpose,
    # gamma folded in as one f32 scalar multiply on the MXU result.
    sim = jax.lax.dot_general(
        qn, kn_ref[...],
        dimension_numbers=(((1,), (1,)), ((), ())),
        preferred_element_type=jnp.float32) * jnp.float32(gamma)         # [TM, B_pad] f32

    col = jax.lax.broadcasted_iota(jnp.int32, sim.shape, 1)              # [TM, B_pad]
    labels = label_ref[...]                                              # [TM, 1]
    picked = jnp.sum(jnp.where(col == labels, sim, jnp.float32(0.0)),
                     axis=1, keepdims=True)                              # [TM, 1]

    # Numerically stable logsumexp; padded key columns masked out.
    sim_m = jnp.where(col < b_real, sim, jnp.float32(-1e30))
    m = jnp.max(sim_m, axis=1, keepdims=True)
    lse = m + jnp.log(jnp.sum(jnp.exp(sim_m - m), axis=1, keepdims=True))  # [TM, 1]

    # Mask padded query rows out of the mean and accumulate the partial sum.
    rows = i * tm + jax.lax.broadcasted_iota(jnp.int32, (tm, 1), 0)
    contrib = jnp.where(rows < b_real, lse - picked, jnp.float32(0.0))
    acc_ref[...] = acc_ref[...] + jnp.sum(contrib, keepdims=True)

    @pl.when(i == pl.num_programs(0) - 1)
    def _finalize():
        out_ref[...] = acc_ref[...] * jnp.float32(1.0 / b_real)


def instance_loss(feature, label=None, gamma=1.0, block_rows=256):
    """JAX/Pallas equivalent of InstanceLoss(gamma).forward(feature, label)."""
    feature = jnp.asarray(feature, dtype=jnp.float32)
    B, D = feature.shape

    if label is None:
        sim_label = jnp.arange(B, dtype=jnp.int32)
    else:
        # TODO(synk): torch.unique(label, return_inverse=True) (data-dependent
        # sort) has no clean Pallas equivalent; done with jnp.unique in JAX.
        _, inv = jnp.unique(jnp.asarray(label), return_inverse=True, size=B)
        sim_label = jnp.ravel(inv).astype(jnp.int32)

    # Pad D to the 128-lane width, B to an MXU/sublane-friendly tile multiple.
    d_pad = _round_up(D, 128)
    if B <= block_rows:
        tm = _round_up(B, 8)
        b_pad = tm
    else:
        tm = block_rows
        b_pad = _round_up(B, tm)
    nb = b_pad // tm

    feat_p = jnp.zeros((b_pad, d_pad), jnp.float32).at[:B, :D].set(feature)
    lab_p = jnp.full((b_pad, 1), -1, jnp.int32).at[:B, 0].set(sim_label)

    # VMEM budget: resident f32 features + bf16 normalized scratch + per-tile
    # sim and elementwise temps.  Leave headroom; cap well below physical VMEM.
    est = (b_pad * d_pad * (4 + 2)        # resident features + bf16 normalized scratch
           + 6 * tm * b_pad * 4           # sim tile + elementwise temps
           + 2 * tm * d_pad * 4)          # query tile temps
    vmem_limit = int(min(max(est + (4 << 20), 32 << 20), 96 << 20))

    kernel = functools.partial(_instance_loss_kernel,
                               gamma=float(gamma), tm=tm, b_real=B)
    out = pl.pallas_call(
        kernel,
        out_shape=jax.ShapeDtypeStruct((1, 1), jnp.float32),
        grid_spec=pltpu.PrefetchScalarGridSpec(
            num_scalar_prefetch=0,
            grid=(nb,),
            in_specs=[
                pl.BlockSpec((b_pad, d_pad), lambda i: (0, 0)),  # resident keys/features
                pl.BlockSpec((tm, 1), lambda i: (i, 0)),         # per-tile targets
            ],
            out_specs=pl.BlockSpec((1, 1), lambda i: (0, 0)),
            scratch_shapes=[
                pltpu.VMEM((b_pad, d_pad), jnp.bfloat16),  # normalized rows (bf16)
                pltpu.VMEM((1, 1), jnp.float32),           # loss accumulator
            ],
        ),
        # The grid axis carries the accumulator / key-scratch dependency -> "arbitrary".
        compiler_params=pltpu.CompilerParams(
            dimension_semantics=("arbitrary",),
            vmem_limit_bytes=vmem_limit),
    )(feat_p, lab_p)
    return out[0, 0]


def _reference_loss(feature, label=None, gamma=1.0):
    # Pure-JAX f32 reference for sanity checking.
    x = jnp.asarray(feature, dtype=jnp.float32)
    B = x.shape[0]
    norm = jnp.sqrt(jnp.sum(x * x, axis=1, keepdims=True)) + 1e-6
    xn = x / norm
    sim = (xn * gamma) @ xn.T
    if label is None:
        tgt = jnp.arange(B)
    else:
        _, inv = jnp.unique(jnp.asarray(label), return_inverse=True, size=B)
        tgt = jnp.ravel(inv)
    logp = jax.nn.log_softmax(sim, axis=1)
    return -jnp.mean(logp[jnp.arange(B), tgt])


if __name__ == "__main__":
    key = jax.random.PRNGKey(0)
    B, D = 8, 32  # small batch of feature vectors, as implied by forward()
    feature = jax.random.normal(key, (B, D), dtype=jnp.float32)

    # label=None path (arange targets).
    loss = jax.block_until_ready(instance_loss(feature, label=None, gamma=1.0))
    ref = _reference_loss(feature, None, 1.0)
    # bf16 MXU operands loosen the tolerance vs. a pure-f32 reference.
    assert jnp.allclose(loss, ref, atol=1e-2, rtol=1e-2), (loss, ref)

    # explicit-label path (unique-inverse targets) with gamma != 1.
    label = jnp.array([3, 3, 7, 1, 1, 9, 9, 9], dtype=jnp.int32)
    loss2 = jax.block_until_ready(instance_loss(feature, label=label, gamma=2.0))
    ref2 = _reference_loss(feature, label, 2.0)
    assert jnp.allclose(loss2, ref2, atol=1e-2, rtol=1e-2), (loss2, ref2)

    print("KERNEL_OK")
</pallas_src>

<mosaic_0001>
module attributes {stable_mosaic.version = 11 : i64} {
  func.func @_instance_loss_kernel(%arg0: i32, %arg1: memref<8x128xf32, #tpu.memory_space<vmem>>, %arg2: memref<8x1xi32, #tpu.memory_space<vmem>>, %arg3: memref<1x1xf32, #tpu.memory_space<vmem>>, %arg4: memref<8x128xbf16, #tpu.memory_space<vmem>>, %arg5: memref<1x1xf32, #tpu.memory_space<vmem>>) attributes {dimension_semantics = [#tpu.dimension_semantics<arbitrary>], iteration_bounds = array<i64: 1>, scalar_prefetch = 0 : i64, scratch_operands = 2 : i64, tpu.core_type = #tpu.core_type<tc>, window_params = [{pipeline_mode = #tpu.pipeline_mode<synchronous>, transform_indices = @transform_0, window_bounds = array<i64: 8, 128>}, {transform_indices = @transform_1, window_bounds = array<i64: 8, 1>}, {pipeline_mode = #tpu.pipeline_mode<synchronous>, transform_indices = @transform_2, window_bounds = array<i64: 1, 1>}]} {
    %c0_i32 = arith.constant 0 : i32
    %0 = arith.cmpi eq, %arg0, %c0_i32 : i32
    %1 = arith.extui %0 : i1 to i32
    %c0_i32_0 = arith.constant 0 : i32
    %2 = arith.cmpi ne, %1, %c0_i32_0 : i32
    scf.if %2 {
      %c0_22 = arith.constant 0 : index
      %c0_23 = arith.constant 0 : index
      %52 = vector.load %arg1[%c0_22, %c0_23] : memref<8x128xf32, #tpu.memory_space<vmem>>, vector<8x128xf32>
      %53 = arith.mulf %52, %52 : vector<8x128xf32>
      %cst_24 = arith.constant dense<0.000000e+00> : vector<8xf32>
      %54 = vector.multi_reduction <add>, %53, %cst_24 [1] : vector<8x128xf32> to vector<8xf32>
      %55 = vector.shape_cast %54 : vector<8xf32> to vector<8x1xf32>
      %56 = math.sqrt %55 : vector<8x1xf32>
      %cst_25 = arith.constant 9.99999997E-7 : f32
      %57 = vector.broadcast %cst_25 : f32 to vector<8x1xf32>
      %58 = arith.addf %56, %57 : vector<8x1xf32>
      %59 = tpu.reciprocal %58 : vector<8x1xf32> -> vector<8x1xf32>
      %60 = vector.broadcast %59 : vector<8x1xf32> to vector<8x128xf32>
      %61 = arith.mulf %52, %60 : vector<8x128xf32>
      %62 = arith.truncf %61 : vector<8x128xf32> to vector<8x128xbf16>
      %c0_26 = arith.constant 0 : index
      %c0_27 = arith.constant 0 : index
      %63 = vector.load %arg4[%c0_26, %c0_27] : memref<8x128xbf16, #tpu.memory_space<vmem>>, vector<8x128xbf16>
      tpu.vector_store %arg4[%c0_26, %c0_27], %62 {strides = array<i32>} : memref<8x128xbf16, #tpu.memory_space<vmem>>, vector<8x128xbf16>,
      %cst_28 = arith.constant 0.000000e+00 : f32
      %64 = vector.broadcast %cst_28 : f32 to vector<1x1xf32>
      %c0_29 = arith.constant 0 : index
      %c0_30 = arith.constant 0 : index
      %65 = vector.load %arg5[%c0_29, %c0_30] : memref<1x1xf32, #tpu.memory_space<vmem>>, vector<1x1xf32>
      tpu.vector_store %arg5[%c0_29, %c0_30], %64 {strides = array<i32>} : memref<1x1xf32, #tpu.memory_space<vmem>>, vector<1x1xf32>,
    } else {
    }
    %c8_i32 = arith.constant 8 : i32
    %3 = arith.muli %arg0, %c8_i32 : i32
    %4 = tpu.assume_multiple %3, 8 : i32
    %5 = arith.index_cast %4 : i32 to index
    %c0 = arith.constant 0 : index
    %6 = vector.load %arg4[%5, %c0] : memref<8x128xbf16, #tpu.memory_space<vmem>>, vector<8x128xbf16>
    %c0_1 = arith.constant 0 : index
    %c0_2 = arith.constant 0 : index
    %7 = vector.load %arg4[%c0_1, %c0_2] : memref<8x128xbf16, #tpu.memory_space<vmem>>, vector<8x128xbf16>
    %cst = arith.constant dense<0.000000e+00> : vector<8x8xf32>
    %8 = tpu.matmul %6, %7, %cst {dimension_numbers = #tpu.dot_dimension_numbers<[1], [1], [0], [0], [0, 0, 1, 0], [], []>} : vector<8x128xbf16>, vector<8x128xbf16>, vector<8x8xf32> -> vector<8x8xf32>
    %cst_3 = arith.constant 1.000000e+00 : f32
    %9 = vector.broadcast %cst_3 : f32 to vector<8x8xf32>
    %10 = arith.mulf %8, %9 : vector<8x8xf32>
    %11 = tpu.iota {dimensions = array<i32: 1>} : vector<8x8xi32>
    %c0_4 = arith.constant 0 : index
    %c0_5 = arith.constant 0 : index
    %12 = vector.load %arg2[%c0_4, %c0_5] : memref<8x1xi32, #tpu.memory_space<vmem>>, vector<8x1xi32>
    %13 = vector.broadcast %12 : vector<8x1xi32> to vector<8x8xi32>
    %14 = arith.cmpi eq, %11, %13 : vector<8x8xi32>
    %cst_6 = arith.constant 0.000000e+00 : f32
    %15 = vector.broadcast %cst_6 : f32 to vector<8x8xf32>
    %16 = arith.select %14, %10, %15 : vector<8x8xi1>, vector<8x8xf32>
    %cst_7 = arith.constant dense<0.000000e+00> : vector<8xf32>
    %17 = vector.multi_reduction <add>, %16, %cst_7 [1] : vector<8x8xf32> to vector<8xf32>
    %18 = vector.shape_cast %17 : vector<8xf32> to vector<8x1xf32>
    %c8_i32_8 = arith.constant 8 : i32
    %19 = vector.broadcast %c8_i32_8 : i32 to vector<8x8xi32>
    %20 = arith.cmpi slt, %11, %19 : vector<8x8xi32>
    %cst_9 = arith.constant -1.000000e+30 : f32
    %21 = vector.broadcast %cst_9 : f32 to vector<8x8xf32>
    %22 = arith.select %20, %10, %21 : vector<8x8xi1>, vector<8x8xf32>
    %cst_10 = arith.constant dense<0xFF800000> : vector<8xf32>
    %23 = vector.multi_reduction <maximumf>, %22, %cst_10 [1] : vector<8x8xf32> to vector<8xf32>
    %24 = vector.shape_cast %23 : vector<8xf32> to vector<8x1xf32>
    %25 = vector.broadcast %24 : vector<8x1xf32> to vector<8x8xf32>
    %26 = arith.subf %22, %25 : vector<8x8xf32>
    %27 = math.exp %26 : vector<8x8xf32>
    %cst_11 = arith.constant dense<0.000000e+00> : vector<8xf32>
    %28 = vector.multi_reduction <add>, %27, %cst_11 [1] : vector<8x8xf32> to vector<8xf32>
    %29 = vector.shape_cast %28 : vector<8xf32> to vector<8x1xf32>
    %30 = math.log %29 : vector<8x1xf32>
    %31 = arith.addf %24, %30 : vector<8x1xf32>
    %c8_i32_12 = arith.constant 8 : i32
    %32 = arith.muli %arg0, %c8_i32_12 : i32
    %33 = tpu.iota {dimensions = array<i32: 0>} : vector<8x1xi32>
    %34 = vector.broadcast %32 : i32 to vector<8x1xi32>
    %35 = arith.addi %34, %33 : vector<8x1xi32>
    %c8_i32_13 = arith.constant 8 : i32
    %36 = vector.broadcast %c8_i32_13 : i32 to vector<8x1xi32>
    %37 = arith.cmpi slt, %35, %36 : vector<8x1xi32>
    %38 = arith.subf %31, %18 : vector<8x1xf32>
    %cst_14 = arith.constant 0.000000e+00 : f32
    %39 = vector.broadcast %cst_14 : f32 to vector<8x1xf32>
    %40 = arith.select %37, %38, %39 : vector<8x1xi1>, vector<8x1xf32>
    %c0_15 = arith.constant 0 : index
    %c0_16 = arith.constant 0 : index
    %41 = vector.load %arg5[%c0_15, %c0_16] : memref<1x1xf32, #tpu.memory_space<vmem>>, vector<1x1xf32>
    %42 = vector.shape_cast %40 : vector<8x1xf32> to vector<1x8x1xf32>
    %cst_17 = arith.constant dense<0.000000e+00> : vector<1xf32>
    %43 = vector.multi_reduction <add>, %42, %cst_17 [1, 2] : vector<1x8x1xf32> to vector<1xf32>
    %44 = vector.shape_cast %43 : vector<1xf32> to vector<1x1x1xf32>
    %45 = vector.extract %44[0, 0, 0] : f32 from vector<1x1x1xf32>
    %46 = vector.broadcast %45 : f32 to vector<1x1xf32>
    %47 = arith.addf %41, %46 : vector<1x1xf32>
    %c0_18 = arith.constant 0 : index
    %c0_19 = arith.constant 0 : index
    %48 = vector.load %arg5[%c0_18, %c0_19] : memref<1x1xf32, #tpu.memory_space<vmem>>, vector<1x1xf32>
    tpu.vector_store %arg5[%c0_18, %c0_19], %47 {strides = array<i32>} : memref<1x1xf32, #tpu.memory_space<vmem>>, vector<1x1xf32>,
    %c0_i32_20 = arith.constant 0 : i32
    %49 = arith.cmpi eq, %arg0, %c0_i32_20 : i32
    %50 = arith.extui %49 : i1 to i32
    %c0_i32_21 = arith.constant 0 : i32
    %51 = arith.cmpi ne, %50, %c0_i32_21 : i32
    scf.if %51 {
      %c0_22 = arith.constant 0 : index
      %c0_23 = arith.constant 0 : index
      %52 = vector.load %arg5[%c0_22, %c0_23] : memref<1x1xf32, #tpu.memory_space<vmem>>, vector<1x1xf32>
      %cst_24 = arith.constant 1.250000e-01 : f32
      %53 = vector.broadcast %cst_24 : f32 to vector<1x1xf32>
      %54 = arith.mulf %52, %53 : vector<1x1xf32>
      %c0_25 = arith.constant 0 : index
      %c0_26 = arith.constant 0 : index
      %55 = vector.load %arg3[%c0_25, %c0_26] : memref<1x1xf32, #tpu.memory_space<vmem>>, vector<1x1xf32>
      tpu.vector_store %arg3[%c0_25, %c0_26], %54 {strides = array<i32>} : memref<1x1xf32, #tpu.memory_space<vmem>>, vector<1x1xf32>,
    } else {
    }
    return
  }
  func.func @transform_0(%arg0: i32) -> (i32, i32) {
    %c0_i32 = arith.constant 0 : i32
    %c0_i32_0 = arith.constant 0 : i32
    %c0_i32_1 = arith.constant 0 : i32
    return %c0_i32, %c0_i32_0 : i32, i32
  }
  func.func @transform_1(%arg0: i32) -> (i32, i32) {
    %c0_i32 = arith.constant 0 : i32
    %c0_i32_0 = arith.constant 0 : i32
    return %arg0, %c0_i32 : i32, i32
  }
  func.func @transform_2(%arg0: i32) -> (i32, i32) {
    %c0_i32 = arith.constant 0 : i32
    %c0_i32_0 = arith.constant 0 : i32
    %c0_i32_1 = arith.constant 0 : i32
    return %c0_i32, %c0_i32_0 : i32, i32
  }
}

</mosaic_0001>

<llo_original>
// kernel: tpu_custom_call.1
$region0: #{tpu_custom_call.1}
  #allocation0 [shape = 'u32[]', space=smem, size = 0x4, offset = 0x4, fixed_abs, tag = 'smem constant byte address 0x4 - core index']
  #allocation1 [shape = 'u32[144,128]{1,0:T(1,128)}', space=vmem, size = 0x12000, scoped, tag = 'internal scratch']
  #allocation2 [shape = 'bf16[8,128]{1,0:T(8,128)(2,1)}', space=vmem, size = 0x800, scoped, tag = 'scratch operand']
  #allocation3 [shape = 'f32[1,1]{1,0:T(1,128)}', space=vmem, size = 0x200, scoped, tag = 'scratch operand']
  %s0 = inlined_call_operand.vmem [shape: f32[8,128], index: 0, kind: input, shape index: {}]
  %s1 = inlined_call_operand.vmem [shape: s32[8,1], index: 1, kind: input, shape index: {}]
  %s2 = inlined_call_operand.hbm [shape: f32[1,1], index: 2, kind: output, shape index: {}]
  %s3 = sld [smem:[#allocation0]]
  $region26: #{tpu_custom_call.1} parent=0
    _
  %s5 = ssub.s32 1, %s3
  %s6 = scalar_select 0, %s5, %s3
  $region1: #{tpu_custom_call.1} parent=0
    #allocation4 [shape = 'u8[512]{0}', space=vmem, size = 0x400, scoped, tag = 'output window, operand 0, single buffered']
    #allocation5 [shape = 's32[1]{0}', space=sflag, size = 0x4, scoped, tag = 'scoped memory for tpu_custom_call.1']
    %7 = vsyncpa [#allocation5], 0
    // Predicated region
    $region2: #{tpu_custom_call.1} parent=1 // pred_check
      _
    $region3: #{tpu_custom_call.1} parent=1 // pred_check_branch
      %9 = sbr.rel (0) target = $region5
    $region4: #{tpu_custom_call.1} parent=1 // pred_region
      _
    $region5: #{tpu_custom_call.1} parent=1 // pred_fallthru
      _
    // Predicated region
    $region6: #{tpu_custom_call.1} parent=1 // pred_check
      _
    $region7: #{tpu_custom_call.1} parent=1 // pred_check_branch
      %11 = sbr.rel (0) target = $region9
    $region8: #{tpu_custom_call.1} parent=1 // pred_region
      _
    $region9: #{tpu_custom_call.1} parent=1 // pred_fallthru
      _
    %p13 = scmp.eq.s32.totalorder 0, 0
    // Predicated region
    $region10: #{tpu_custom_call.1} parent=1 // pred_check
      %p14 = pneg %p13
    $region11: #{tpu_custom_call.1} parent=1 // pred_check_branch
      %16 = sbr.rel (%p14) target = $region13
    $region12: #{tpu_custom_call.1} parent=1 // pred_region
      %v17 = vld [vmem:[%s0] sm:$0xff]
      %v18 = vmul.f32 %v17, %v17
      %19 = vadd.xlane.f32.xlu0 %v18
      %v20 = vpop.xlane.xlu0 %19
      %v21 = vrsqrt.pop %v20
      %v22 = vmul.f32 %v20, %v21
      %vm23 = vcmp.eq.f32.partialorder %v20, inf
      %v24 = vsel %vm23, %v20, %v22
      %vm25 = vcmp.eq.f32.partialorder %v20, 0.0
      %v26 = vand.u32 %v20, 2147483648
      %v27 = vsel %vm25, %v26, %v24
      %v28 = vadd.f32 %v27, 1e-06
      %v29 = vrcp.pop %v28
      %v30 = vmul.f32 %v17, %v29
      %v31 = vpack.c.bf16 %v30, %v30
      %32 = vst [vmem:[#allocation2] sm:$0xf] %v31
      %vm33 = vcmask 0
      %34 = vst.msk [vmem:[#allocation3] sm:$0x1] %vm33, 0.0
    $region13: #{tpu_custom_call.1} parent=1 // pred_fallthru
      _
    %s35 = smul.u32 0, 8
    %s36 = sshra.s32 %s35, 3
    %s37 = sand.u32 %s35, 7
    %s38 = smul.addr %s36, 4
    %s39 = scalar_lea.vmem [#allocation2], %s38
    %v40 = vld [vmem:[%s39] sm:$0xf]
    %v41 = vld [vmem:[#allocation2] sm:$0xf]
    %42 = vmatprep.subr.bf16.mxu0 0
    %43 = vmatpush1.bf16.xpose.msra.mxu0 %v41
    %44 = vmatprep.subr.bf16.mxu0 0
    %45 = vmatpush1.bf16.xpose.msra.mxu0 0
    %46 = vmatprep.subr.bf16.mxu0 0
    %47 = vmatpush1.bf16.xpose.msra.mxu0 0
    %48 = vmatprep.subr.bf16.mxu0 0
    %49 = vmatpush1.bf16.xpose.msra.mxu0 0
    %50 = vmatprep.subr.bf16.mxu0 0
    %51 = vmatpush1.bf16.xpose.msra.mxu0 0
    %52 = vmatprep.subr.bf16.mxu0 0
    %53 = vmatpush1.bf16.xpose.msra.mxu0 0
    %54 = vmatprep.subr.bf16.mxu0 0
    %55 = vmatpush1.bf16.xpose.msra.mxu0 0
    %56 = vmatprep.subr.bf16.mxu0 0
    %57 = vmatpush1.bf16.xpose.msra.mxu0 0
    %58 = vmatprep.subr.bf16.mxu0 0
    %59 = vmatpush1.bf16.xpose.msra.mxu0 0
    %60 = vmatprep.subr.bf16.mxu0 0
    %61 = vmatpush1.bf16.xpose.msra.mxu0 0
    %62 = vmatprep.subr.bf16.mxu0 0
    %63 = vmatpush1.bf16.xpose.msra.mxu0 0
    %64 = vmatprep.subr.bf16.mxu0 0
    %65 = vmatpush1.bf16.xpose.msra.mxu0 0
    %66 = vmatprep.subr.bf16.mxu0 0
    %67 = vmatpush1.bf16.xpose.msra.mxu0 0
    %68 = vmatprep.subr.bf16.mxu0 0
    %69 = vmatpush1.bf16.xpose.msra.mxu0 0
    %70 = vmatprep.subr.bf16.mxu0 0
    %71 = vmatpush1.bf16.xpose.msra.mxu0 0
    %72 = vmatprep.subr.bf16.mxu0 0
    %73 = vmatpush1.bf16.xpose.msra.mxu0 0
    %74 = vmatprep.mubr.bf16.mxu0 0
    %75 = vmatmul.mubr.bf16.gmra.mrb[0].mxu0 %v40
    %v76 = vpop.f32.mrb[0].mxu0
    %v77 = vadd.f32 0.0, %v76
    %v78 = vpop.f32.mrb[0].mxu0
    %v79 = vpop.f32.mrb[0].mxu0
    %v80 = vpop.f32.mrb[0].mxu0
    %81 = vdwg.mxu0
    %v82 = vlaneseq
    %v83 = vand.u32 %v82, 127
    %v84 = vld [vmem:[%s1] sm:$0xff]
    %85 = vset.pattern.permute.xlu0 0
    %86 = vperm.xlu0 %85, %v84
    %v87 = vpop.permute.xlu0 %86
    %vm88 = vcmp.eq.s32.totalorder %v83, %v87
    %v89 = vsel %vm88, %v77, 0.0
    %vm90 = vcmask 64512
    %v91 = vsel %vm90, %v89, 0.0
    %92 = vadd.xlane.f32.xlu0 %v91
    %v93 = vpop.xlane.xlu0 %92
    %vm94 = vcmp.lt.s32.totalorder %v83, 8
    %v95 = vsel %vm94, %v77, -1e+30
    %v96 = vsel %vm90, %v95, -inf
    %97 = vmax.xlane.f32.xlu0 %v96
    %v98 = vpop.xlane.xlu0 %97
    %v99 = vsub.f32 %v95, %v98
    %v100 = vmul.f32 %v99, 1.442695
    %v101 = vpow.pop %v100
    %v102 = vsel %vm90, %v101, 0.0
    %103 = vadd.xlane.f32.xlu0 %v102
    %v104 = vpop.xlane.xlu0 %103
    %v105 = vlog2.pop %v104
    %v106 = vmul.f32 %v105, 0.6931472
    %v107 = vadd.f32 %v98, %v106
    %v108 = vlaneseq
    %v109 = vshrl.u32 %v108, 7
    %v110 = vstv %s35
    %v111 = vadd.s32 %v110, %v109
    %vm112 = vcmp.lt.s32.totalorder %v111, 8
    %v113 = vsub.f32 %v107, %v93
    %v114 = vsel %vm112, %v113, 0.0
    %v115 = vld [vmem:[#allocation3] sm:$0x1]
    %vm116 = vcmask 7168
    %v117 = vsel %vm116, %v114, 0.0
    %118 = vadd.xlane.f32.xlu0 %v117
    %v119 = vpop.xlane.xlu0 %118
    %v120 = vrot.slane %v119, 4
    %v121 = vadd.f32 %v119, %v120
    %v122 = vrot.slane %v121, 2
    %v123 = vadd.f32 %v121, %v122
    %v124 = vrot.slane %v123, 1
    %v125 = vadd.f32 %v123, %v124
    %s126 = vtos %v125
    %v127 = vstv %s126
    %v128 = vadd.f32 %v115, %v127
    %vm129 = vcmask 0
    %130 = vst.msk [vmem:[#allocation3] sm:$0x1] %vm129, %v128
    // Predicated region
    $region14: #{tpu_custom_call.1} parent=1 // pred_check
      %p131 = pneg %p13
    $region15: #{tpu_custom_call.1} parent=1 // pred_check_branch
      %133 = sbr.rel (%p131) target = $region17
    $region16: #{tpu_custom_call.1} parent=1 // pred_region
      %v134 = vld [vmem:[#allocation3] sm:$0x1]
      %v135 = vmul.f32 %v134, 0.125
      %136 = vst.msk [vmem:[#allocation4] sm:$0x1] %vm129, %v135
    $region17: #{tpu_custom_call.1} parent=1 // pred_fallthru
      _
    // Predicated region
    $region18: #{tpu_custom_call.1} parent=1 // pred_check
      _
    $region19: #{tpu_custom_call.1} parent=1 // pred_check_branch
      %138 = sbr.rel (0) target = $region21
    $region20: #{tpu_custom_call.1} parent=1 // pred_region
      %s140 = ssub.s32 16, 16
      %141 = vsyncadd [#allocation5], %s140
      %s143 = sshll.u32 [#allocation4], 4
      %s144 = int_to_ptr.vmem [resolvable:$true] %s143
      %146 = dma.vmem_to_hbm [thread:$0]  %s144, 16, %s2, [#allocation5]
    $region21: #{tpu_custom_call.1} parent=1 // pred_fallthru
      _
    // Predicated region
    $region22: #{tpu_custom_call.1} parent=1 // pred_check
      _
    $region23: #{tpu_custom_call.1} parent=1 // pred_check_branch
      %148 = sbr.rel (0) target = $region25
    $region24: #{tpu_custom_call.1} parent=1 // pred_region
      %149 = dma.done [#allocation5], 16
    $region25: #{tpu_custom_call.1} parent=1 // pred_fallthru
      _
    %150 = vsyncpa [#allocation5], 1

</llo_original>
